<compile_context>
chip_gen: v6e
topology: v6e:2x2x1
jax: 0.10.0
libtpu: 0.0.40
codegen_flags: <defaults>
</compile_context>

<pallas_src>
import jax
import jax.numpy as jnp
from jax.experimental import pallas as pl
from jax.experimental.pallas import tpu as pltpu

_LANE = 128
_GRAY_W = (0.2989, 0.587, 0.114)


def _round_up(x, m):
    return (x + m - 1) // m * m


def _vmem_capacity_bytes():
    """Physical per-core VMEM (trace-time query); conservative fallback."""
    try:
        info = pltpu.get_tpu_info()
        cap = getattr(info, "vmem_capacity_bytes", None)
        if cap:
            return int(cap)
    except Exception:
        pass
    return 64 * 1024 * 1024          # assume the smallest (v7x-class) part


def _chip_config():
    cap = _vmem_capacity_bytes()
    if cap <= 64 * 1024 * 1024:
        # v7x-class: 64 MiB VMEM per TensorCore, 2 TCs per chip.  Keep
        # in+out double-buffered f32 tiles (~6x tile) under ~48 MiB and insist
        # on >= 2 grid steps so both cores get work.
        return dict(vmem_limit=48 << 20, path_a_budget=6 << 20,
                    path_b_block=2 << 20, min_grid_steps=2)
    # v5e / v6e: 128 MiB physical VMEM, single TensorCore (grid = serial loop),
    # so prefer the largest tile that fits and allow a single grid step.
    return dict(vmem_limit=64 << 20, path_a_budget=8 << 20,
                path_b_block=4 << 20, min_grid_steps=1)


# --------------------------------------------------------------------------
# Path A: small / mid images — single pass, B whole images per grid step,
# per-image mean computed inside the kernel.  2 HBM passes (read + write).
# --------------------------------------------------------------------------
def _make_single_pass_kernel(inv_npix):
    def kernel(factor_ref, x_ref, o_ref):
        # factor_ref: SMEM scalar-prefetch (1,) f32
        # x_ref/o_ref: (B, C, P, 128) lane-dense VMEM tiles
        f = factor_ref[0]
        x = x_ref[...].astype(jnp.float32)                      # one load
        gray = (_GRAY_W[0] * x[:, 0] + _GRAY_W[1] * x[:, 1]
                + _GRAY_W[2] * x[:, 2])                         # (B, P, 128)
        # Padded lanes are zero, so dividing by the true pixel count keeps the
        # per-image mean exact.
        mean = jnp.sum(gray, axis=(-2, -1), keepdims=True) * inv_npix  # (B,1,1)
        bias = ((1.0 - f) * mean)[:, None]                      # (B,1,1,1)
        # Single fused blend + one full-width lane-dense store.
        o_ref[...] = jnp.clip(f * x + bias, 0.0, 1.0).astype(o_ref.dtype)

    return kernel


def _pick_batch(n, per_image_bytes, budget_bytes, min_steps):
    """Largest divisor of n whose tile fits the budget; on multi-TensorCore
    chips keep at least `min_steps` grid steps so every core gets work."""
    best = 1
    for b in range(1, n + 1):
        if n % b:
            continue
        if b * per_image_bytes > budget_bytes:
            break
        if n >= min_steps and n // b < min_steps:
            break
        best = b
    return best


def _single_pass(x, factor, n_pix, per_image_bytes, budget_bytes, min_steps,
                 vmem_limit):
    N, C, P, L = x.shape
    B = _pick_batch(N, per_image_bytes, budget_bytes, min_steps)
    itemsize = jnp.dtype(x.dtype).itemsize
    cost = pl.CostEstimate(
        flops=7 * N * C * P * L,
        transcendentals=0,
        bytes_accessed=2 * N * C * P * L * itemsize,
    )
    return pl.pallas_call(
        _make_single_pass_kernel(1.0 / float(n_pix)),
        out_shape=jax.ShapeDtypeStruct(x.shape, x.dtype),
        grid_spec=pltpu.PrefetchScalarGridSpec(
            num_scalar_prefetch=1,
            grid=(N // B,),
            in_specs=[pl.BlockSpec((B, C, P, L), lambda i, f_ref: (i, 0, 0, 0))],
            out_specs=pl.BlockSpec((B, C, P, L), lambda i, f_ref: (i, 0, 0, 0)),
        ),
        compiler_params=pltpu.CompilerParams(
            dimension_semantics=("parallel",),
            vmem_limit_bytes=vmem_limit,
        ),
        cost_estimate=cost,
    )(factor, x)


# --------------------------------------------------------------------------
# Path B: large images — per-image mean hoisted to one fused XLA reduction,
# elementwise blend over a lane-dense (N*C, H*W) view tiled along the lane
# axis.  3 HBM passes total (reduce-read + kernel-read + write) — the floor
# when the image does not fit in VMEM.  No pad / slice copies.
# --------------------------------------------------------------------------
def _tiled_kernel(factor_ref, x_ref, bias_ref, o_ref):
    # factor_ref: SMEM scalar-prefetch (1,) f32
    # x_ref/o_ref: (R, tc) lane-dense tile (R = N*C rows)
    # bias_ref:    (R, 1)  f32 = (1 - factor) * per-image mean, one per row
    f = factor_ref[0]
    o_ref[...] = jnp.clip(
        f * x_ref[...].astype(jnp.float32) + bias_ref[...], 0.0, 1.0
    ).astype(o_ref.dtype)


def _tiled(x2, bias_rows, factor, block_bytes, vmem_limit):
    R, HW = x2.shape
    itemsize = jnp.dtype(x2.dtype).itemsize
    # Lane-axis tile: multiple of 128, sized so one (R, tc) block ~ block_bytes.
    # Row (sublane) dim is the full array dim R, so no dtype-dependent sublane
    # rounding is needed.  If HW % tc != 0 (or HW % 128 != 0) the last block's
    # out-of-bounds lanes are read as garbage and the stores are masked —
    # harmless numerically, only the last block pays a masked-vst cost.
    hw_pad = _round_up(HW, _LANE)
    tc = max(_LANE, (block_bytes // max(R * itemsize, 1)) // _LANE * _LANE)
    tc = min(tc, hw_pad)
    num_blocks = pl.cdiv(HW, tc)
    cost = pl.CostEstimate(
        flops=4 * R * HW,
        transcendentals=0,
        bytes_accessed=2 * R * HW * itemsize + 4 * R * num_blocks,
    )
    return pl.pallas_call(
        _tiled_kernel,
        out_shape=jax.ShapeDtypeStruct(x2.shape, x2.dtype),
        grid_spec=pltpu.PrefetchScalarGridSpec(
            num_scalar_prefetch=1,
            grid=(num_blocks,),
            in_specs=[
                # If a profile ever shows exposed DMA at small tiles, try
                # pipeline_mode=pl.Buffered(3) here; default depth 2 otherwise.
                pl.BlockSpec((R, tc), lambda s, f_ref: (0, s)),
                pl.BlockSpec((R, 1), lambda s, f_ref: (0, 0)),
            ],
            out_specs=pl.BlockSpec((R, tc), lambda s, f_ref: (0, s)),
        ),
        compiler_params=pltpu.CompilerParams(
            dimension_semantics=("parallel",),
            vmem_limit_bytes=vmem_limit,
        ),
        cost_estimate=cost,
    )(factor, x2, bias_rows)


# --------------------------------------------------------------------------
# Public wrapper
# --------------------------------------------------------------------------
def contrast_transform(img, factor, *, single_pass_budget_bytes=None,
                       tile_block_bytes=None):
    """img: (N, 3, H, W) float in [0, 1].  factor: scalar float32."""
    N, C, H, W = img.shape
    assert C == 3, "adjust_contrast path implemented for RGB (C=3)"
    assert jnp.issubdtype(img.dtype, jnp.floating), "float images only"

    cfg = _chip_config()
    budget = cfg["path_a_budget"] if single_pass_budget_bytes is None \
        else single_pass_budget_bytes
    block_bytes = cfg["path_b_block"] if tile_block_bytes is None \
        else tile_block_bytes

    factor = jnp.asarray(factor, jnp.float32).reshape((1,))
    n_pix = H * W
    P = pl.cdiv(n_pix, _LANE)
    padded = P * _LANE
    # f32 working-set per image (kernel computes in f32) — used for tiling.
    per_image_f32 = C * padded * 4

    if per_image_f32 <= budget:
        # ---- Path A: whole images per grid step, mean computed in-kernel.
        # Pad/slice only when H*W % 128 != 0, which only happens here (small
        # images) where the extra copy is cheap.
        x = img.reshape(N, C, n_pix)
        if padded != n_pix:
            x = jnp.pad(x, ((0, 0), (0, 0), (0, padded - n_pix)))
        x = x.reshape(N, C, P, _LANE)
        out = _single_pass(x, factor, n_pix, per_image_f32, budget,
                           cfg["min_grid_steps"], cfg["vmem_limit"])
        out = out.reshape(N, C, padded)
        if padded != n_pix:
            out = out[:, :, :n_pix]
        return out.reshape(N, C, H, W)

    # ---- Path B: large images.  Per-image grayscale mean = one fused XLA
    # reduction pass over img in the same layout the kernel reads (no pad, no
    # relayout copy), then a pure elementwise blend over the (N*C, H*W) view.
    imgf = img.astype(jnp.float32)
    gray = (_GRAY_W[0] * imgf[:, 0] + _GRAY_W[1] * imgf[:, 1]
            + _GRAY_W[2] * imgf[:, 2])
    means = jnp.mean(gray, axis=(-2, -1))                       # (N,)
    bias = (1.0 - factor[0]) * means                            # (N,)
    bias_rows = jnp.broadcast_to(bias[:, None], (N, C))
    bias_rows = bias_rows.reshape(N * C, 1).astype(jnp.float32)

    x2 = img.reshape(N * C, n_pix)                              # view, no copy
    out2 = _tiled(x2, bias_rows, factor, block_bytes, cfg["vmem_limit"])
    return out2.reshape(N, C, H, W)


def contrast_transform_module(img, key):
    """Mirrors the PyTorch module: draws factor ~ U[1.2, 2) then adjusts."""
    factor = jax.random.uniform(key, (), jnp.float32, minval=1.2, maxval=2.0)
    return contrast_transform(img, factor)


def contrast_transform_ref(img, factor):
    """Pure-JAX reference mirroring torchvision adjust_contrast (float path)."""
    factor = jnp.asarray(factor, jnp.float32)
    w = jnp.array(_GRAY_W, jnp.float32).reshape(1, 3, 1, 1)
    gray = jnp.sum(img.astype(jnp.float32) * w, axis=1, keepdims=True)
    mean = jnp.mean(gray, axis=(1, 2, 3), keepdims=True)
    return jnp.clip(factor * img + (1.0 - factor) * mean, 0.0, 1.0).astype(img.dtype)


if __name__ == "__main__":
    key = jax.random.PRNGKey(0)
    k_img, k_img2, k_img3, k_factor = jax.random.split(key, 4)

    # random.uniform(1.2, 2) replaced with a deterministic PRNG draw.
    factor = jax.random.uniform(k_factor, (), dtype=jnp.float32,
                                minval=1.2, maxval=2.0)

    # 1) Path A: small 128-aligned images (H*W % 128 == 0), whole batch per step.
    img = jax.random.uniform(k_img, (2, 3, 16, 16), dtype=jnp.float32)
    out = jax.block_until_ready(contrast_transform(img, factor))
    ref = contrast_transform_ref(img, factor)
    assert out.shape == img.shape and out.dtype == img.dtype
    assert jnp.allclose(out, ref, atol=1e-5, rtol=1e-5), "path-A mismatch"

    # 2) Path B (what large images take), forced with a zero Path-A budget and
    #    tiny blocks so multiple lane tiles are exercised: hoisted mean +
    #    lane-tiled elementwise blend, no padding copies.
    img2 = jax.random.uniform(k_img2, (2, 3, 32, 64), dtype=jnp.float32)
    out2 = jax.block_until_ready(
        contrast_transform(img2, factor, single_pass_budget_bytes=0,
                           tile_block_bytes=8 * 1024))
    ref2 = contrast_transform_ref(img2, factor)
    assert out2.shape == img2.shape and out2.dtype == img2.dtype
    assert jnp.allclose(out2, ref2, atol=1e-5, rtol=1e-5), "path-B mismatch"

    # 3) Path A with lane padding (H*W % 128 != 0).
    img3 = jax.random.uniform(k_img3, (2, 3, 10, 12), dtype=jnp.float32)
    out3 = jax.block_until_ready(contrast_transform(img3, factor))
    ref3 = contrast_transform_ref(img3, factor)
    assert out3.shape == img3.shape and out3.dtype == img3.dtype
    assert jnp.allclose(out3, ref3, atol=1e-5, rtol=1e-5), "lane-pad mismatch"

    # 4) Path B with a non-128-aligned lane dim (masked last block, no padding).
    out4 = jax.block_until_ready(
        contrast_transform(img3, factor, single_pass_budget_bytes=0))
    assert jnp.allclose(out4, ref3, atol=1e-5, rtol=1e-5), "path-B mask mismatch"

    # 5) Module-style entry point (factor drawn in [1.2, 2) like the nn.Module).
    out5 = jax.block_until_ready(contrast_transform_module(img, k_factor))
    assert out5.shape == img.shape and out5.dtype == img.dtype

    print("KERNEL_OK")
</pallas_src>

<mosaic_0001>
module attributes {stable_mosaic.version = 11 : i64} {
  func.func @kernel(%arg0: i32, %arg1: memref<1xf32, #tpu.memory_space<smem>>, %arg2: memref<1x3x2x128xf32, #tpu.memory_space<vmem>>, %arg3: memref<1x3x2x128xf32, #tpu.memory_space<vmem>>) attributes {dimension_semantics = [#tpu.dimension_semantics<parallel>], iteration_bounds = array<i64: 2>, scalar_prefetch = 1 : i64, scratch_operands = 0 : i64, tpu.core_type = #tpu.core_type<tc>, window_params = [{transform_indices = @transform_0, window_bounds = array<i64: 1, 3, 2, 128>}, {transform_indices = @transform_1, window_bounds = array<i64: 1, 3, 2, 128>}]} {
    %c0 = arith.constant 0 : index
    %0 = memref.load %arg1[%c0] : memref<1xf32, #tpu.memory_space<smem>>
    %c0_0 = arith.constant 0 : index
    %c0_1 = arith.constant 0 : index
    %c0_2 = arith.constant 0 : index
    %c0_3 = arith.constant 0 : index
    %1 = vector.load %arg2[%c0_0, %c0_1, %c0_2, %c0_3] : memref<1x3x2x128xf32, #tpu.memory_space<vmem>>, vector<1x3x2x128xf32>
    %2 = vector.extract_strided_slice %1 {offsets = [0, 0, 0, 0], sizes = [1, 1, 2, 128], strides = [1, 1, 1, 1]} : vector<1x3x2x128xf32> to vector<1x1x2x128xf32>
    %3 = vector.shape_cast %2 : vector<1x1x2x128xf32> to vector<1x2x128xf32>
    %cst = arith.constant 2.989000e-01 : f32
    %4 = vector.broadcast %cst : f32 to vector<1x2x128xf32>
    %5 = arith.mulf %4, %3 : vector<1x2x128xf32>
    %6 = vector.extract_strided_slice %1 {offsets = [0, 1, 0, 0], sizes = [1, 1, 2, 128], strides = [1, 1, 1, 1]} : vector<1x3x2x128xf32> to vector<1x1x2x128xf32>
    %7 = vector.shape_cast %6 : vector<1x1x2x128xf32> to vector<1x2x128xf32>
    %cst_4 = arith.constant 5.870000e-01 : f32
    %8 = vector.broadcast %cst_4 : f32 to vector<1x2x128xf32>
    %9 = arith.mulf %8, %7 : vector<1x2x128xf32>
    %10 = arith.addf %5, %9 : vector<1x2x128xf32>
    %11 = vector.extract_strided_slice %1 {offsets = [0, 2, 0, 0], sizes = [1, 1, 2, 128], strides = [1, 1, 1, 1]} : vector<1x3x2x128xf32> to vector<1x1x2x128xf32>
    %12 = vector.shape_cast %11 : vector<1x1x2x128xf32> to vector<1x2x128xf32>
    %cst_5 = arith.constant 1.140000e-01 : f32
    %13 = vector.broadcast %cst_5 : f32 to vector<1x2x128xf32>
    %14 = arith.mulf %13, %12 : vector<1x2x128xf32>
    %15 = arith.addf %10, %14 : vector<1x2x128xf32>
    %cst_6 = arith.constant dense<0.000000e+00> : vector<1xf32>
    %16 = vector.multi_reduction <add>, %15, %cst_6 [1, 2] : vector<1x2x128xf32> to vector<1xf32>
    %17 = vector.shape_cast %16 : vector<1xf32> to vector<1x1x1xf32>
    %cst_7 = arith.constant 3.906250e-03 : f32
    %18 = vector.broadcast %cst_7 : f32 to vector<1x1x1xf32>
    %19 = arith.mulf %17, %18 : vector<1x1x1xf32>
    %cst_8 = arith.constant 1.000000e+00 : f32
    %20 = arith.subf %cst_8, %0 : f32
    %21 = vector.broadcast %20 : f32 to vector<1x1x1xf32>
    %22 = arith.mulf %21, %19 : vector<1x1x1xf32>
    %23 = vector.shape_cast %22 : vector<1x1x1xf32> to vector<1x1x1x1xf32>
    %24 = vector.broadcast %0 : f32 to vector<1x3x2x128xf32>
    %25 = arith.mulf %24, %1 : vector<1x3x2x128xf32>
    %26 = vector.broadcast %23 : vector<1x1x1x1xf32> to vector<1x3x2x128xf32>
    %27 = arith.addf %25, %26 : vector<1x3x2x128xf32>
    %cst_9 = arith.constant 0.000000e+00 : f32
    %cst_10 = arith.constant 1.000000e+00 : f32
    %28 = vector.broadcast %cst_9 : f32 to vector<1x3x2x128xf32>
    %29 = arith.maximumf %28, %27 : vector<1x3x2x128xf32>
    %30 = vector.broadcast %cst_10 : f32 to vector<1x3x2x128xf32>
    %31 = arith.minimumf %30, %29 : vector<1x3x2x128xf32>
    %c0_11 = arith.constant 0 : index
    %c0_12 = arith.constant 0 : index
    %c0_13 = arith.constant 0 : index
    %c0_14 = arith.constant 0 : index
    %32 = vector.load %arg3[%c0_11, %c0_12, %c0_13, %c0_14] : memref<1x3x2x128xf32, #tpu.memory_space<vmem>>, vector<1x3x2x128xf32>
    tpu.vector_store %arg3[%c0_11, %c0_12, %c0_13, %c0_14], %31 {strides = array<i32>} : memref<1x3x2x128xf32, #tpu.memory_space<vmem>>, vector<1x3x2x128xf32>,
    return
  }
  func.func @transform_0(%arg0: i32, %arg1: memref<1xf32, #tpu.memory_space<smem>>) -> (i32, i32, i32, i32) {
    %c0_i32 = arith.constant 0 : i32
    %c0_i32_0 = arith.constant 0 : i32
    %c0_i32_1 = arith.constant 0 : i32
    %c0_i32_2 = arith.constant 0 : i32
    return %arg0, %c0_i32, %c0_i32_0, %c0_i32_1 : i32, i32, i32, i32
  }
  func.func @transform_1(%arg0: i32, %arg1: memref<1xf32, #tpu.memory_space<smem>>) -> (i32, i32, i32, i32) {
    %c0_i32 = arith.constant 0 : i32
    %c0_i32_0 = arith.constant 0 : i32
    %c0_i32_1 = arith.constant 0 : i32
    %c0_i32_2 = arith.constant 0 : i32
    return %arg0, %c0_i32, %c0_i32_0, %c0_i32_1 : i32, i32, i32, i32
  }
}

</mosaic_0001>

<llo_original>
// kernel: tpu_custom_call.1
$region0: #{tpu_custom_call.1}
  #allocation0 [shape = 'u32[]', space=smem, size = 0x4, offset = 0x4, fixed_abs, tag = 'smem constant byte address 0x4 - core index']
  #allocation1 [shape = 'u32[144,128]{1,0:T(1,128)}', space=vmem, size = 0x12000, scoped, tag = 'internal scratch']
  #allocation2 [shape = 's32[1]{0}', space=sflag, size = 0x4, scoped, tag = 'scoped memory for tpu_custom_call.1']
  #allocation3 [shape = 'f32[1]{0:T(128)S(6)}', space=smem, size = 0x200, scoped, tag = 'prefetched SMEM operand 0']
  %s0 = inlined_call_operand.<no memory space> [shape: f32[1], index: 0, kind: input, shape index: {}]
  %s1 = inlined_call_operand.hbm [shape: f32[2,3,2,128], index: 1, kind: input, shape index: {}]
  %s2 = inlined_call_operand.hbm [shape: f32[2,3,2,128], index: 2, kind: output, shape index: {}]
  %s3 = sld [smem:[#allocation0]]
  $region41: #{tpu_custom_call.1} parent=0
    _
  %s5 = ssub.s32 1, %s3
  %s6 = scalar_select 0, %s5, %s3
  %7 = sst [smem:[#allocation3]] %s0
  $region1: #{tpu_custom_call.1} parent=0
    #allocation4 [shape = 'u8[6144]{0}', space=vmem, size = 0x1800, scoped, tag = 'input window, operand 1']
    #allocation5 [shape = 's32[2]{0}', space=sflag, size = 0x8, scoped, tag = 'scoped memory for tpu_custom_call.1']
    #allocation6 [shape = 's32[2]{0}', space=sflag, size = 0x8, scoped, tag = 'scoped memory for tpu_custom_call.1']
    #allocation7 [shape = 'u8[6144]{0}', space=vmem, size = 0x1800, scoped, tag = 'output window, operand 0']
    %8 = vsyncpa [#allocation5], 0
    %s9 = scalar_lea.sflag [#allocation5], 1
    %10 = vsyncpa %s9, 0
    %11 = vsyncpa [#allocation6], 0
    %s12 = scalar_lea.sflag [#allocation6], 1
    %13 = vsyncpa %s12, 0
    loop: start=0, step=1, limit=4
    $region2: #{tpu_custom_call.1} parent=1 // loop_pre_header
      _
    $region3: #{tpu_custom_call.1} parent=1 // loop_header
      %s15 = sphi 0, %s19
      %p16 = scmp.ge.s32.totalorder %s15, 4
      %s25 = sphi 0, %s27
      %s28 = sphi 0, %s25
      %s29 = sphi 0, %s28
      %s45 = sphi 0, %s29
      %s51 = sphi 0, %s53
      %s54 = sphi 0, %s51
      %s55 = sphi 0, %s54
      %s71 = sphi 0, %s55
    $region4: #{tpu_custom_call.1} parent=1 // loop_header_branch
      %18 = sbr.rel (%p16) target = $region8
    $region5: #{tpu_custom_call.1} parent=1 // loop_body
      %s20 = ssub.s32 %s15, 1
      %s21 = ssub.s32 %s15, 2
      %s22 = sadd.s32 %s15, 1
      %s23 = ssub.s32 %s15, %s22
      %p24 = scmp.eq.s32.totalorder %s23, 0
      %s26 = sadd.s32 %s25, 1
      %s27 = scalar_select %p24, %s25, %s26
      %p30 = pneg %p24
      %p31 = scmp.eq.s32.totalorder %s15, 1
      %p32 = por %p30, %p31
      %p33 = scmp.ne.s32.totalorder %s25, %s28
      %p34 = scmp.eq.s32.totalorder %s15, 0
      %p35 = por %p33, %p34
      %p36 = scmp.ne.s32.totalorder %s25, %s28
      %p37 = scmp.eq.s32.totalorder %s20, 1
      %p38 = por %p36, %p37
      %p39 = scmp.ne.s32.totalorder %s28, %s29
      %p40 = scmp.eq.s32.totalorder %s20, 0
      %p41 = por %p39, %p40
      %p42 = scmp.ne.s32.totalorder %s28, %s29
      %p43 = scmp.eq.s32.totalorder %s21, 1
      %p44 = por %p42, %p43
      %p46 = scmp.ne.s32.totalorder %s29, %s45
      %p47 = scmp.eq.s32.totalorder %s21, 0
      %p48 = por %p46, %p47
      %s49 = ssub.s32 %s15, %s22
      %p50 = scmp.eq.s32.totalorder %s49, 0
      %s52 = sadd.s32 %s51, 1
      %s53 = scalar_select %p50, %s51, %s52
      %p56 = pneg %p50
      %p57 = scmp.eq.s32.totalorder %s15, 1
      %p58 = por %p56, %p57
      %p59 = scmp.ne.s32.totalorder %s51, %s54
      %p60 = scmp.eq.s32.totalorder %s15, 0
      %p61 = por %p59, %p60
      %p62 = scmp.ne.s32.totalorder %s51, %s54
      %p63 = scmp.eq.s32.totalorder %s20, 1
      %p64 = por %p62, %p63
      %p65 = scmp.ne.s32.totalorder %s54, %s55
      %p66 = scmp.eq.s32.totalorder %s20, 0
      %p67 = por %p65, %p66
      %p68 = scmp.ne.s32.totalorder %s54, %s55
      %p69 = scmp.eq.s32.totalorder %s21, 1
      %p70 = por %p68, %p69
      %p72 = scmp.ne.s32.totalorder %s55, %s71
      %p73 = scmp.eq.s32.totalorder %s21, 0
      %p74 = por %p72, %p73
      %p75 = scmp.le.s32.totalorder 1, %s15
      %p76 = scmp.lt.s32.totalorder %s15, 3
      %p77 = pnand %p75, %p76
      %p78 = pneg %p77
      // Predicated region
      $region9: #{tpu_custom_call.1} parent=5 // pred_check
        _
      $region10: #{tpu_custom_call.1} parent=5 // pred_check_branch
        %80 = sbr.rel (%p77) target = $region12
      $region11: #{tpu_custom_call.1} parent=5 // pred_region
        %s81 = ssub.s32 %s15, 1
      $region12: #{tpu_custom_call.1} parent=5 // pred_fallthru
        _
      %p82 = scmp.lt.s32.totalorder %s15, 2
      // Predicated region
      $region13: #{tpu_custom_call.1} parent=5 // pred_check
        %p83 = pneg %p82
      $region14: #{tpu_custom_call.1} parent=5 // pred_check_branch
        %85 = sbr.rel (%p83) target = $region16
      $region15: #{tpu_custom_call.1} parent=5 // pred_region
        // Predicated region
        $region17: #{tpu_custom_call.1} parent=15 // pred_check
          %p86 = pneg %p35
        $region18: #{tpu_custom_call.1} parent=15 // pred_check_branch
          %88 = sbr.rel (%p86) target = $region20
        $region19: #{tpu_custom_call.1} parent=15 // pred_region
          %s89 = sand.u32 %s25, 1
          %s90 = scalar_lea.sflag [#allocation5], %s89
          %s91 = sand.u32 %s25, 1
          %s92 = smul.addr %s91, 6
          %s93 = scalar_lea.vmem [#allocation4], %s92
          %s95 = ssub.s32 96, 96
          %96 = vsyncadd %s90, %s95
          %s97 = smul.addr %s15, 3
          %s98 = smul.addr %s97, 32
          %s99 = scalar_lea.hbm %s1, %s98
          %s100 = sshll.u32 %s93, 4
          %s101 = int_to_ptr.vmem [resolvable:$true] %s100
          %106 = dma.hbm_to_vmem [thread:$0]  %s99, 96, %s101, %s90, 32, 32, 2
        $region20: #{tpu_custom_call.1} parent=15 // pred_fallthru
          _
      $region16: #{tpu_custom_call.1} parent=5 // pred_fallthru
        _
      %p107 = scmp.le.s32.totalorder 1, %s15
      %p108 = scmp.lt.s32.totalorder %s15, 3
      %p109 = pnand %p107, %p108
      %p110 = pneg %p109
      // Predicated region
      $region21: #{tpu_custom_call.1} parent=5 // pred_check
        _
      $region22: #{tpu_custom_call.1} parent=5 // pred_check_branch
        %112 = sbr.rel (%p109) target = $region24
      $region23: #{tpu_custom_call.1} parent=5 // pred_region
        %s113 = ssub.s32 %s15, 1
        %s114 = sand.u32 %s28, 1
        %s115 = scalar_lea.sflag [#allocation5], %s114
        %s116 = sand.u32 %s28, 1
        %s117 = smul.addr %s116, 6
        %s118 = scalar_lea.vmem [#allocation4], %s117
        // Predicated region
        $region25: #{tpu_custom_call.1} parent=23 // pred_check
          %p119 = pneg %p41
        $region26: #{tpu_custom_call.1} parent=23 // pred_check_branch
          %121 = sbr.rel (%p119) target = $region28
        $region27: #{tpu_custom_call.1} parent=23 // pred_region
          %122 = dma.done %s115, 96
        $region28: #{tpu_custom_call.1} parent=23 // pred_fallthru
          _
        %s123 = sand.u32 %s28, 1
        %s124 = scalar_lea.sflag [#allocation5], %s123
        %s125 = sand.u32 %s28, 1
        %s126 = smul.addr %s125, 6
        %s127 = scalar_lea.vmem [#allocation4], %s126
        %p128 = pneg %p41
        %p129 = pneg %p38
        %p130 = pneg %p67
        %p131 = pneg %p64
        %s132 = sand.u32 %s54, 1
        %s133 = scalar_lea.sflag [#allocation6], %s132
        %s134 = sand.u32 %s54, 1
        %s135 = smul.addr %s134, 6
        %s136 = scalar_lea.vmem [#allocation7], %s135
        %s137 = sld [smem:[#allocation3]]
        %v138 = vld [vmem:[%s118] sm:$0x3]
        %v139 = vld [vmem:[%s118 + $0x2] sm:$0x3]
        %v140 = vld [vmem:[%s118 + $0x4] sm:$0x3]
        %v141 = vmul.f32 %v138, 0.2989
        %v142 = vmul.f32 %v139, 0.587
        %v143 = vadd.f32 %v141, %v142
        %v144 = vmul.f32 %v140, 0.114
        %v145 = vadd.f32 %v143, %v144
        %vm146 = vcmask 1041408
        %v147 = vsel %vm146, %v145, 0.0
        %148 = vadd.xlane.f32.xlu0 %v147
        %v149 = vpop.xlane.xlu0 %148
        %v150 = vrot.slane %v149, 4
        %v151 = vadd.f32 %v149, %v150
        %v152 = vrot.slane %v151, 2
        %v153 = vadd.f32 %v151, %v152
        %v154 = vrot.slane %v153, 1
        %v155 = vadd.f32 %v153, %v154
        %v156 = vmul.f32 %v155, 0.00390625
        %s157 = ssub.f32 1.0, %s137
        %v158 = vstv %s157
        %v159 = vmul.f32 %v158, %v156
        %v160 = vstv %s137
        %v161 = vmul.f32 %v160, %v138
        %v162 = vmul.f32 %v160, %v139
        %v163 = vmul.f32 %v160, %v140
        %v164 = vadd.f32 %v161, %v159
        %v165 = vadd.f32 %v162, %v159
        %v166 = vadd.f32 %v163, %v159
        %v167 = vmax.f32 %v164, 0.0
        %v168 = vmax.f32 %v165, 0.0
        %v169 = vmax.f32 %v166, 0.0
        %v170 = vmin.f32 %v167, 1.0
        %v171 = vmin.f32 %v168, 1.0
        %v172 = vmin.f32 %v169, 1.0
        %173 = vst [vmem:[%s136] sm:$0x3] %v170
        %174 = vst [vmem:[%s136 + $0x2] sm:$0x3] %v171
        %175 = vst [vmem:[%s136 + $0x4] sm:$0x3] %v172
        %s176 = sand.u32 %s54, 1
        %s177 = scalar_lea.sflag [#allocation6], %s176
        %s178 = sand.u32 %s54, 1
        %s179 = smul.addr %s178, 6
        %s180 = scalar_lea.vmem [#allocation7], %s179
        // Predicated region
        $region29: #{tpu_custom_call.1} parent=23 // pred_check
          %p181 = pneg %p64
        $region30: #{tpu_custom_call.1} parent=23 // pred_check_branch
          %183 = sbr.rel (%p181) target = $region32
        $region31: #{tpu_custom_call.1} parent=23 // pred_region
          %s185 = ssub.s32 96, 96
          %186 = vsyncadd %s177, %s185
          %s187 = smul.addr %s20, 3
          %s188 = smul.addr %s187, 32
          %s189 = scalar_lea.hbm %s2, %s188
          %s190 = sshll.u32 %s180, 4
          %s191 = int_to_ptr.vmem [resolvable:$true] %s190
          %196 = dma.vmem_to_hbm [thread:$0]  %s191, 96, %s189, %s177, 32, 32, 2
        $region32: #{tpu_custom_call.1} parent=23 // pred_fallthru
          _
      $region24: #{tpu_custom_call.1} parent=5 // pred_fallthru
        _
      %p197 = scmp.le.s32.totalorder 2, %s15
      // Predicated region
      $region33: #{tpu_custom_call.1} parent=5 // pred_check
        %p198 = pneg %p197
      $region34: #{tpu_custom_call.1} parent=5 // pred_check_branch
        %200 = sbr.rel (%p198) target = $region36
      $region35: #{tpu_custom_call.1} parent=5 // pred_region
        %s201 = ssub.s32 %s15, 2
        // Predicated region
        $region37: #{tpu_custom_call.1} parent=35 // pred_check
          %p202 = pneg %p70
        $region38: #{tpu_custom_call.1} parent=35 // pred_check_branch
          %204 = sbr.rel (%p202) target = $region40
        $region39: #{tpu_custom_call.1} parent=35 // pred_region
          %s205 = sand.u32 %s55, 1
          %s206 = scalar_lea.sflag [#allocation6], %s205
          %s207 = sand.u32 %s55, 1
          %s208 = smul.addr %s207, 6
          %s209 = scalar_lea.vmem [#allocation7], %s208
          %210 = dma.done %s206, 96
        $region40: #{tpu_custom_call.1} parent=35 // pred_fallthru
          _
      $region36: #{tpu_custom_call.1} parent=5 // pred_fallthru
        _
    $region6: #{tpu_custom_call.1} parent=1 // loop_footer
      %s19 = sadd.s32 1, %s15
    $region7: #{tpu_custom_call.1} parent=1 // loop_footer_branch
      %14 = sbr.rel target = $region3
    $region8: #{tpu_custom_call.1} parent=1 // loop_exit
      _
    %211 = vsyncpa [#allocation5], 1
    %s212 = scalar_lea.sflag [#allocation5], 1
    %213 = vsyncpa %s212, 1
    %214 = vsyncpa [#allocation6], 1
    %s215 = scalar_lea.sflag [#allocation6], 1
    %216 = vsyncpa %s215, 1

</llo_original>
